<compile_context>
chip_gen: v5e
topology: v5e:2x2
jax: 0.10.0
libtpu: 0.0.40
codegen_flags: <defaults>
</compile_context>

<pallas_src>
import functools

import jax
import jax.numpy as jnp
from jax.experimental import pallas as pl
from jax.experimental.pallas import tpu as pltpu

IN_FEATURES = 500
SUBLANE = 8


def _linear_kernel(x_ref, w_ref, b_ref, o_ref):
    # One batch tile per grid step: (TM, 500) @ (500, C) on the MXU with f32
    # accumulation; bias broadcast-add on the VPU; cast to the output dtype.
    acc = jnp.dot(x_ref[...], w_ref[...], preferred_element_type=jnp.float32)
    o_ref[...] = (acc + b_ref[...]).astype(o_ref.dtype)


@functools.partial(jax.jit, static_argnames=("tm", "core_parallel"))
def classifier_forward(x, w_t, b, *, tm=2048, core_parallel=False):
    """Linear(500 -> n_classes).

    x:   (B, 500)  float32 or bfloat16
    w_t: (500, C)  same dtype family (PyTorch weight transposed)
    b:   (1, C)
    returns (B, C) in x.dtype
    """
    B, K = x.shape
    Kw, C = w_t.shape
    assert K == IN_FEATURES and Kw == IN_FEATURES and b.shape == (1, C)

    out_dtype = x.dtype

    # Small-batch fast path: single full-array block (any B is legal when the
    # block dim equals the full array dim).  Large batch: TM must stay a
    # multiple of 8 (it is); the ragged last tile is masked by Pallas.
    tm_eff = tm if B > tm else B
    grid = (pl.cdiv(B, tm_eff),)

    cost = pl.CostEstimate(
        flops=2 * B * K * C,
        transcendentals=0,
        bytes_accessed=(x.size * x.dtype.itemsize
                        + w_t.size * w_t.dtype.itemsize
                        + b.size * b.dtype.itemsize
                        + B * C * jnp.dtype(out_dtype).itemsize),
    )

    # Batch axis is embarrassingly parallel.  CORE_PARALLEL gets both v7x
    # TensorCores' DMA engines pulling x tiles; plain "parallel" elsewhere.
    dim_sem = (pltpu.CORE_PARALLEL,) if core_parallel else ("parallel",)

    # NOTE: if tuning tm beyond 2048 on v5e, also pass
    # vmem_limit_bytes (v5e's default scoped VMEM is only 16 MiB).
    return pl.pallas_call(
        _linear_kernel,
        out_shape=jax.ShapeDtypeStruct((B, C), out_dtype),
        grid_spec=pl.GridSpec(
            grid=grid,
            in_specs=[
                # x: one (TM, 500) batch tile per grid step (pipelined).
                pl.BlockSpec((tm_eff, K), lambda i: (i, 0)),
                # weight / bias: constant index -> resident in VMEM.
                pl.BlockSpec((K, C), lambda i: (0, 0)),
                pl.BlockSpec((1, C), lambda i: (0, 0)),
            ],
            out_specs=pl.BlockSpec((tm_eff, C), lambda i: (i, 0)),
        ),
        compiler_params=pltpu.CompilerParams(
            dimension_semantics=dim_sem,
        ),
        cost_estimate=cost,
    )(x, w_t, b)


def init_classifier_params(key, n_classes, dtype=jnp.float32):
    """Matches nn.Linear(500, n_classes) with kaiming_normal_ weight init
    (fan_in=500, gain=sqrt(2)) and PyTorch's default uniform bias init."""
    kw, kb = jax.random.split(key)
    fan_in = IN_FEATURES
    std = (2.0 / fan_in) ** 0.5                   # kaiming_normal_, a=0
    # PyTorch weight shape is (n_classes, 500); store it transposed.
    w = std * jax.random.normal(kw, (n_classes, fan_in), dtype=dtype)
    w_t = jnp.transpose(w)                        # (500, n_classes)
    bound = 1.0 / (fan_in ** 0.5)
    b = jax.random.uniform(kb, (1, n_classes), dtype=dtype,
                           minval=-bound, maxval=bound)
    return w_t, b


if __name__ == "__main__":
    key = jax.random.PRNGKey(0)
    k_x, k_p = jax.random.split(key)

    batch = 2
    n_classes = 10

    x = jax.random.normal(k_x, (batch, IN_FEATURES), dtype=jnp.float32)
    w_t, b = init_classifier_params(k_p, n_classes)

    out = classifier_forward(x, w_t, b)
    out = jax.block_until_ready(out)

    # Sanity check against plain-JAX reference of the same linear layer.
    ref = x @ w_t + b
    assert out.shape == (batch, n_classes)
    assert jnp.allclose(out, ref, atol=1e-4, rtol=1e-4)

    # Also exercise the tiled (multi-grid-step, ragged last tile) path.
    big_B = 4100                                   # > tm, not a multiple of tm
    xb = jax.random.normal(k_x, (big_B, IN_FEATURES), dtype=jnp.float32)
    outb = jax.block_until_ready(classifier_forward(xb, w_t, b, tm=2048))
    refb = xb @ w_t + b
    assert outb.shape == (big_B, n_classes)
    assert jnp.allclose(outb, refb, atol=1e-4, rtol=1e-4)

    print("KERNEL_OK")
</pallas_src>

<mosaic_0001>
module attributes {stable_mosaic.version = 11 : i64} {
  func.func @_linear_kernel(%arg0: i32, %arg1: memref<2x500xf32, #tpu.memory_space<vmem>>, %arg2: memref<500x10xf32, #tpu.memory_space<vmem>>, %arg3: memref<1x10xf32, #tpu.memory_space<vmem>>, %arg4: memref<2x10xf32, #tpu.memory_space<vmem>>) attributes {dimension_semantics = [#tpu.dimension_semantics<parallel>], iteration_bounds = array<i64: 1>, scalar_prefetch = 0 : i64, scratch_operands = 0 : i64, tpu.core_type = #tpu.core_type<tc>, window_params = [{transform_indices = @transform_0, window_bounds = array<i64: 2, 500>}, {pipeline_mode = #tpu.pipeline_mode<synchronous>, transform_indices = @transform_1, window_bounds = array<i64: 500, 10>}, {pipeline_mode = #tpu.pipeline_mode<synchronous>, transform_indices = @transform_2, window_bounds = array<i64: 1, 10>}, {transform_indices = @transform_3, window_bounds = array<i64: 2, 10>}]} {
    %c0 = arith.constant 0 : index
    %c0_0 = arith.constant 0 : index
    %0 = vector.load %arg1[%c0, %c0_0] : memref<2x500xf32, #tpu.memory_space<vmem>>, vector<2x500xf32>
    %c0_1 = arith.constant 0 : index
    %c0_2 = arith.constant 0 : index
    %1 = vector.load %arg2[%c0_1, %c0_2] : memref<500x10xf32, #tpu.memory_space<vmem>>, vector<500x10xf32>
    %cst = arith.constant dense<0.000000e+00> : vector<2x10xf32>
    %2 = tpu.matmul %0, %1, %cst {dimension_numbers = #tpu.dot_dimension_numbers<[1], [0], [0], [1], [0, 0, 1, 1], [], []>} : vector<2x500xf32>, vector<500x10xf32>, vector<2x10xf32> -> vector<2x10xf32>
    %c0_3 = arith.constant 0 : index
    %c0_4 = arith.constant 0 : index
    %3 = vector.load %arg3[%c0_3, %c0_4] : memref<1x10xf32, #tpu.memory_space<vmem>>, vector<1x10xf32>
    %4 = vector.broadcast %3 : vector<1x10xf32> to vector<2x10xf32>
    %5 = arith.addf %2, %4 : vector<2x10xf32>
    %c0_5 = arith.constant 0 : index
    %c0_6 = arith.constant 0 : index
    %6 = vector.load %arg4[%c0_5, %c0_6] : memref<2x10xf32, #tpu.memory_space<vmem>>, vector<2x10xf32>
    tpu.vector_store %arg4[%c0_5, %c0_6], %5 {strides = array<i32>} : memref<2x10xf32, #tpu.memory_space<vmem>>, vector<2x10xf32>,
    return
  }
  func.func @transform_0(%arg0: i32) -> (i32, i32) {
    %c0_i32 = arith.constant 0 : i32
    %c0_i32_0 = arith.constant 0 : i32
    return %arg0, %c0_i32 : i32, i32
  }
  func.func @transform_1(%arg0: i32) -> (i32, i32) {
    %c0_i32 = arith.constant 0 : i32
    %c0_i32_0 = arith.constant 0 : i32
    %c0_i32_1 = arith.constant 0 : i32
    return %c0_i32, %c0_i32_0 : i32, i32
  }
  func.func @transform_2(%arg0: i32) -> (i32, i32) {
    %c0_i32 = arith.constant 0 : i32
    %c0_i32_0 = arith.constant 0 : i32
    %c0_i32_1 = arith.constant 0 : i32
    return %c0_i32, %c0_i32_0 : i32, i32
  }
  func.func @transform_3(%arg0: i32) -> (i32, i32) {
    %c0_i32 = arith.constant 0 : i32
    %c0_i32_0 = arith.constant 0 : i32
    return %arg0, %c0_i32 : i32, i32
  }
}

</mosaic_0001>

<llo_original>
// kernel: classifier_forward.1
$region0: #{classifier_forward.1}
  #allocation0 [shape = 'u32[]', space=smem, size = 0x4, offset = 0x4, fixed_abs, tag = 'smem constant byte address 0x4 - core index']
  #allocation1 [shape = 'u32[72,128]{1,0:T(1,128)}', space=vmem, size = 0x9000, scoped, tag = 'internal scratch']
  %s0 = inlined_call_operand.vmem [shape: f32[2,500], index: 0, kind: input, shape index: {}]
  %s1 = inlined_call_operand.vmem [shape: f32[500,10], index: 1, kind: input, shape index: {}]
  %s2 = inlined_call_operand.vmem [shape: f32[1,10], index: 2, kind: input, shape index: {}]
  %s3 = inlined_call_operand.hbm [shape: f32[2,10], index: 3, kind: output, shape index: {}]
  %s4 = sld [smem:[#allocation0]]
  $region22: #{classifier_forward.1} parent=0
    _
  %s6 = ssub.s32 1, %s4
  %s7 = scalar_select 0, %s6, %s4
  $region1: #{classifier_forward.1} parent=0
    #allocation2 [shape = 'u8[1024]{0}', space=vmem, size = 0x400, scoped, tag = 'output window, operand 0, single buffered']
    #allocation3 [shape = 's32[1]{0}', space=sflag, size = 0x4, scoped, tag = 'scoped memory for classifier_forward.1']
    %8 = vsyncpa [#allocation3], 0
    // Predicated region
    $region2: #{classifier_forward.1} parent=1 // pred_check
      _
    $region3: #{classifier_forward.1} parent=1 // pred_check_branch
      %10 = sbr.rel (0) target = $region5
    $region4: #{classifier_forward.1} parent=1 // pred_region
      _
    $region5: #{classifier_forward.1} parent=1 // pred_fallthru
      _
    // Predicated region
    $region6: #{classifier_forward.1} parent=1 // pred_check
      _
    $region7: #{classifier_forward.1} parent=1 // pred_check_branch
      %12 = sbr.rel (0) target = $region9
    $region8: #{classifier_forward.1} parent=1 // pred_region
      _
    $region9: #{classifier_forward.1} parent=1 // pred_fallthru
      _
    // Predicated region
    $region10: #{classifier_forward.1} parent=1 // pred_check
      _
    $region11: #{classifier_forward.1} parent=1 // pred_check_branch
      %14 = sbr.rel (0) target = $region13
    $region12: #{classifier_forward.1} parent=1 // pred_region
      _
    $region13: #{classifier_forward.1} parent=1 // pred_fallthru
      _
    %v15 = vld [vmem:[%s0] sm:$0xff]
    %v16 = vld [vmem:[%s1] sm:$0xff]
    %v17 = vld [vmem:[%s1 + $0x8] sm:$0xff]
    %v18 = vld [vmem:[%s1 + $0x10] sm:$0xff]
    %v19 = vld [vmem:[%s1 + $0x18] sm:$0xff]
    %v20 = vld [vmem:[%s1 + $0x20] sm:$0xff]
    %v21 = vld [vmem:[%s1 + $0x28] sm:$0xff]
    %v22 = vld [vmem:[%s1 + $0x30] sm:$0xff]
    %v23 = vld [vmem:[%s1 + $0x38] sm:$0xff]
    %v24 = vld [vmem:[%s1 + $0x40] sm:$0xff]
    %v25 = vld [vmem:[%s1 + $0x48] sm:$0xff]
    %v26 = vld [vmem:[%s1 + $0x50] sm:$0xff]
    %v27 = vld [vmem:[%s1 + $0x58] sm:$0xff]
    %v28 = vld [vmem:[%s1 + $0x60] sm:$0xff]
    %v29 = vld [vmem:[%s1 + $0x68] sm:$0xff]
    %v30 = vld [vmem:[%s1 + $0x70] sm:$0xff]
    %v31 = vld [vmem:[%s1 + $0x78] sm:$0xff]
    %v32 = vld [vmem:[%s1 + $0x80] sm:$0xff]
    %v33 = vld [vmem:[%s1 + $0x88] sm:$0xff]
    %v34 = vld [vmem:[%s1 + $0x90] sm:$0xff]
    %v35 = vld [vmem:[%s1 + $0x98] sm:$0xff]
    %v36 = vld [vmem:[%s1 + $0xa0] sm:$0xff]
    %v37 = vld [vmem:[%s1 + $0xa8] sm:$0xff]
    %v38 = vld [vmem:[%s1 + $0xb0] sm:$0xff]
    %v39 = vld [vmem:[%s1 + $0xb8] sm:$0xff]
    %v40 = vld [vmem:[%s1 + $0xc0] sm:$0xff]
    %v41 = vld [vmem:[%s1 + $0xc8] sm:$0xff]
    %v42 = vld [vmem:[%s1 + $0xd0] sm:$0xff]
    %v43 = vld [vmem:[%s1 + $0xd8] sm:$0xff]
    %v44 = vld [vmem:[%s1 + $0xe0] sm:$0xff]
    %v45 = vld [vmem:[%s1 + $0xe8] sm:$0xff]
    %v46 = vld [vmem:[%s1 + $0xf0] sm:$0xff]
    %v47 = vld [vmem:[%s1 + $0xf8] sm:$0xff]
    %v48 = vld [vmem:[%s1 + $0x100] sm:$0xff]
    %v49 = vld [vmem:[%s1 + $0x108] sm:$0xff]
    %v50 = vld [vmem:[%s1 + $0x110] sm:$0xff]
    %v51 = vld [vmem:[%s1 + $0x118] sm:$0xff]
    %v52 = vld [vmem:[%s1 + $0x120] sm:$0xff]
    %v53 = vld [vmem:[%s1 + $0x128] sm:$0xff]
    %v54 = vld [vmem:[%s1 + $0x130] sm:$0xff]
    %v55 = vld [vmem:[%s1 + $0x138] sm:$0xff]
    %v56 = vld [vmem:[%s1 + $0x140] sm:$0xff]
    %v57 = vld [vmem:[%s1 + $0x148] sm:$0xff]
    %v58 = vld [vmem:[%s1 + $0x150] sm:$0xff]
    %v59 = vld [vmem:[%s1 + $0x158] sm:$0xff]
    %v60 = vld [vmem:[%s1 + $0x160] sm:$0xff]
    %v61 = vld [vmem:[%s1 + $0x168] sm:$0xff]
    %v62 = vld [vmem:[%s1 + $0x170] sm:$0xff]
    %v63 = vld [vmem:[%s1 + $0x178] sm:$0xff]
    %v64 = vld [vmem:[%s1 + $0x180] sm:$0xff]
    %v65 = vld [vmem:[%s1 + $0x188] sm:$0xff]
    %v66 = vld [vmem:[%s1 + $0x190] sm:$0xff]
    %v67 = vld [vmem:[%s1 + $0x198] sm:$0xff]
    %v68 = vld [vmem:[%s1 + $0x1a0] sm:$0xff]
    %v69 = vld [vmem:[%s1 + $0x1a8] sm:$0xff]
    %v70 = vld [vmem:[%s1 + $0x1b0] sm:$0xff]
    %v71 = vld [vmem:[%s1 + $0x1b8] sm:$0xff]
    %v72 = vld [vmem:[%s1 + $0x1c0] sm:$0xff]
    %v73 = vld [vmem:[%s1 + $0x1c8] sm:$0xff]
    %v74 = vld [vmem:[%s1 + $0x1d0] sm:$0xff]
    %v75 = vld [vmem:[%s1 + $0x1d8] sm:$0xff]
    %v76 = vld [vmem:[%s1 + $0x1e0] sm:$0xff]
    %v77 = vld [vmem:[%s1 + $0x1e8] sm:$0xff]
    %v78 = vld [vmem:[%s1 + $0x1f0] sm:$0xf]
    %v79 = vld [vmem:[%s2] sm:$0x1]
    %v81 = vperm.slane %v79, 0
    %84 = vst [vmem:[#allocation1] ss:$4 sm:$0xff] %v15
    %v85 = vld.sshfl [vmem:[#allocation1] sm:$0xff pattern:$0x73625140]
    %v86 = vld.sshfl [vmem:[#allocation1 + $0x8] sm:$0xff pattern:$0x73625140]
    %v87 = vld.sshfl [vmem:[#allocation1 + $0x10] sm:$0xff pattern:$0x73625140]
    %v88 = vld.sshfl [vmem:[#allocation1 + $0x18] sm:$0xff pattern:$0x73625140]
    %vm92 = vcmask 949248
    %v93 = vsel %vm92, %v88, 0
    %vm95 = vcmask 1043456
    %v97 = vsel %vm95, %v78, 0
    %99 = vmatpush.msra.mxu0 %v31
    %100 = vmatpush.msra.mxu0 %v30
    %101 = vmatpush.msra.mxu0 %v29
    %102 = vmatpush.msra.mxu0 %v28
    %103 = vmatpush.msra.mxu0 %v27
    %104 = vmatpush.msra.mxu0 %v26
    %105 = vmatpush.msra.mxu0 %v25
    %106 = vmatpush.msra.mxu0 %v24
    %107 = vmatpush.msra.mxu0 %v23
    %108 = vmatpush.msra.mxu0 %v22
    %109 = vmatpush.msra.mxu0 %v21
    %110 = vmatpush.msra.mxu0 %v20
    %111 = vmatpush.msra.mxu0 %v19
    %112 = vmatpush.msra.mxu0 %v18
    %113 = vmatpush.msra.mxu0 %v17
    %114 = vmatpush.msra.mxu0 %v16
    %115 = vmatmul.f32.gmra.mxu0 %v85
    %v116 = vpop.f32.mrf.mxu0
    %v117 = vadd.f32 %v81, %v116
    %118 = vdwg.mxu0
    %119 = vmatpush.msra.mxu0 %v47
    %120 = vmatpush.msra.mxu0 %v46
    %121 = vmatpush.msra.mxu0 %v45
    %122 = vmatpush.msra.mxu0 %v44
    %123 = vmatpush.msra.mxu0 %v43
    %124 = vmatpush.msra.mxu0 %v42
    %125 = vmatpush.msra.mxu0 %v41
    %126 = vmatpush.msra.mxu0 %v40
    %127 = vmatpush.msra.mxu0 %v39
    %128 = vmatpush.msra.mxu0 %v38
    %129 = vmatpush.msra.mxu0 %v37
    %130 = vmatpush.msra.mxu0 %v36
    %131 = vmatpush.msra.mxu0 %v35
    %132 = vmatpush.msra.mxu0 %v34
    %133 = vmatpush.msra.mxu0 %v33
    %134 = vmatpush.msra.mxu0 %v32
    %135 = vmatmul.f32.gmra.mxu0 %v86
    %v136 = vpop.f32.mrf.mxu0
    %v137 = vadd.f32 %v117, %v136
    %138 = vdwg.mxu0
    %139 = vmatpush.msra.mxu0 %v63
    %140 = vmatpush.msra.mxu0 %v62
    %141 = vmatpush.msra.mxu0 %v61
    %142 = vmatpush.msra.mxu0 %v60
    %143 = vmatpush.msra.mxu0 %v59
    %144 = vmatpush.msra.mxu0 %v58
    %145 = vmatpush.msra.mxu0 %v57
    %146 = vmatpush.msra.mxu0 %v56
    %147 = vmatpush.msra.mxu0 %v55
    %148 = vmatpush.msra.mxu0 %v54
    %149 = vmatpush.msra.mxu0 %v53
    %150 = vmatpush.msra.mxu0 %v52
    %151 = vmatpush.msra.mxu0 %v51
    %152 = vmatpush.msra.mxu0 %v50
    %153 = vmatpush.msra.mxu0 %v49
    %154 = vmatpush.msra.mxu0 %v48
    %155 = vmatmul.f32.gmra.mxu0 %v87
    %v156 = vpop.f32.mrf.mxu0
    %v157 = vadd.f32 %v137, %v156
    %158 = vdwg.mxu0
    %159 = vmatpush.msra.mxu0 0.0
    %160 = vmatpush.msra.mxu0 %v97
    %161 = vmatpush.msra.mxu0 %v77
    %162 = vmatpush.msra.mxu0 %v76
    %163 = vmatpush.msra.mxu0 %v75
    %164 = vmatpush.msra.mxu0 %v74
    %165 = vmatpush.msra.mxu0 %v73
    %166 = vmatpush.msra.mxu0 %v72
    %167 = vmatpush.msra.mxu0 %v71
    %168 = vmatpush.msra.mxu0 %v70
    %169 = vmatpush.msra.mxu0 %v69
    %170 = vmatpush.msra.mxu0 %v68
    %171 = vmatpush.msra.mxu0 %v67
    %172 = vmatpush.msra.mxu0 %v66
    %173 = vmatpush.msra.mxu0 %v65
    %174 = vmatpush.msra.mxu0 %v64
    %175 = vmatmul.f32.gmra.mxu0 %v93
    %v176 = vpop.f32.mrf.mxu0
    %v177 = vadd.f32 %v157, %v176
    %178 = vdwg.mxu0
    %vm179 = vcmask 74752
    %180 = vst.msk [vmem:[#allocation2] sm:$0x3] %vm179, %v177
    // Predicated region
    $region14: #{classifier_forward.1} parent=1 // pred_check
      _
    $region15: #{classifier_forward.1} parent=1 // pred_check_branch
      %182 = sbr.rel (0) target = $region17
    $region16: #{classifier_forward.1} parent=1 // pred_region
      %184 = vsyncadd [#allocation3], 0
      %s186 = sshll.u32 [#allocation2], 4
      %s187 = int_to_ptr.vmem [resolvable:$true] %s186
      %s188 = sshll.u32 %s3, 4
      %s189 = int_to_ptr.hbm [resolvable:$true] %s188
      %191 = dma.vmem_to_hbm [thread:$0]  %s187, 32, %s189, [#allocation3]
    $region17: #{classifier_forward.1} parent=1 // pred_fallthru
      _
    // Predicated region
    $region18: #{classifier_forward.1} parent=1 // pred_check
      _
    $region19: #{classifier_forward.1} parent=1 // pred_check_branch
      %193 = sbr.rel (0) target = $region21
    $region20: #{classifier_forward.1} parent=1 // pred_region
      %195 = dma.done [#allocation3], 32
    $region21: #{classifier_forward.1} parent=1 // pred_fallthru
      _
    %196 = vsyncpa [#allocation3], 1

</llo_original>
